<compile_context>
chip_gen: v7x
topology: tpu7x:2x2x1
jax: 0.10.0
libtpu: 0.0.40
codegen_flags: <defaults>
</compile_context>

<pallas_src>
import jax
import jax.numpy as jnp
from jax.experimental import pallas as pl
from jax.experimental.pallas import tpu as pltpu


def _patch_embed_kernel(xp_ref, w_ref, o_ref):
    # xp_ref: (tM, K)   token tile of flattened patches
    # w_ref : (K, E_pad) flattened Conv1d weight (grid-invariant)
    # o_ref : (tM, E_pad)
    o_ref[...] = jnp.dot(
        xp_ref[...], w_ref[...], preferred_element_type=jnp.float32
    ).astype(o_ref.dtype)


def _patch_embed_bias_kernel(xp_ref, w_ref, b_ref, o_ref):
    out = jnp.dot(xp_ref[...], w_ref[...], preferred_element_type=jnp.float32)
    o_ref[...] = (out + b_ref[...].astype(jnp.float32)).astype(o_ref.dtype)


def _round_up(x, m):
    return (x + m - 1) // m * m


def _pick_token_tile(M, K, E_pad, itemsize):
    """Sublane-aligned token tile sized for a ~24 MiB double-buffered budget."""
    sublane = max(8, 32 // max(itemsize, 1))      # 8 (f32), 16 (bf16), 32 (int8)
    k_vmem = _round_up(K, 128)                    # VMEM lane-pads the last dim
    per_row = 2 * (k_vmem + E_pad) * 4            # conservative f32 bytes, x2 buffers
    tM = (24 * 1024 * 1024) // per_row
    tM = max(sublane, min(1024, tM))
    tM -= tM % sublane
    tM = min(tM, _round_up(M, sublane))
    return tM, sublane


def patch_embed(x, w_proj, b_proj=None, *, patch_size):
    """x: (B, C, L); w_proj: (E, C, P) Conv1d weight; b_proj: (E,) or None.

    Returns (B, L // P, E) == Conv1d(C, E, P, stride=P)(x).transpose(1, 2).
    """
    B, C, L = x.shape
    E = w_proj.shape[0]
    P = patch_size
    assert L % P == 0, "input length must be a multiple of patch_size"
    Np = L // P
    K = C * P
    M = B * Np

    # Patch extraction (flattened token axis) and conv-weight flattening.
    xp = x.reshape(B, C, Np, P).transpose(0, 2, 1, 3).reshape(M, K)
    w_t = w_proj.reshape(E, K).T                  # (K, E)

    # Lane-dense output: pad E to a multiple of 128 (zero cols sliced off below).
    E_pad = _round_up(E, 128)
    if E_pad != E:
        w_t = jnp.pad(w_t, ((0, 0), (0, E_pad - E)))

    # Flattened token axis padded to a tile multiple; cdiv-style 1-D grid.
    tM, _ = _pick_token_tile(M, K, E_pad, x.dtype.itemsize)
    M_pad = _round_up(M, tM)
    if M_pad != M:
        xp = jnp.pad(xp, ((0, M_pad - M), (0, 0)))
    grid = (M_pad // tM,)

    in_specs = [
        pl.BlockSpec((tM, K), lambda i: (i, 0)),
        pl.BlockSpec((K, E_pad), lambda i: (0, 0)),     # grid-invariant weight
    ]
    operands = [xp, w_t]
    if b_proj is None:
        kernel = _patch_embed_kernel                     # bias=False (module default)
    else:
        kernel = _patch_embed_bias_kernel
        b2 = b_proj.reshape(1, E)
        if E_pad != E:
            b2 = jnp.pad(b2, ((0, 0), (0, E_pad - E)))
        in_specs.append(pl.BlockSpec((1, E_pad), lambda i: (0, 0)))
        operands.append(b2)

    out = pl.pallas_call(
        kernel,
        out_shape=jax.ShapeDtypeStruct((M_pad, E_pad), x.dtype),
        grid_spec=pl.GridSpec(
            grid=grid,
            in_specs=in_specs,
            out_specs=pl.BlockSpec((tM, E_pad), lambda i: (i, 0)),
        ),
        compiler_params=pltpu.CompilerParams(
            dimension_semantics=("parallel",),
            vmem_limit_bytes=48 * 1024 * 1024,          # fits v7x's 64 MiB VMEM
            allow_input_fusion=[True] + [False] * (len(operands) - 1),
        ),
    )(*operands)

    # TODO(synk): a non-default norm_layer (e.g. LayerNorm) is not fused here;
    # the module default (norm_layer=None -> nn.Identity) is a no-op.
    return out[:M, :E].reshape(B, Np, E)


def patch_embed_ref(x, w_proj, b_proj=None, *, patch_size):
    """Independent pure-JAX reference via strided conv (matches nn.Conv1d)."""
    out = jax.lax.conv_general_dilated(
        x, w_proj, window_strides=(patch_size,), padding="VALID",
        dimension_numbers=("NCH", "OIH", "NCH"))
    if b_proj is not None:
        out = out + b_proj[None, :, None]
    return jnp.transpose(out, (0, 2, 1))


if __name__ == "__main__":
    # Small shapes consistent with the module's forward (B, C, L) -> (B, Np, E).
    B, in_c = 2, 2
    img_size, patch_size = 80, 10          # -> num_patches = 8
    embed_dim = 32

    key = jax.random.PRNGKey(0)
    kx, kw, kb = jax.random.split(key, 3)
    x = jax.random.normal(kx, (B, in_c, img_size), dtype=jnp.float32)
    # Conv1d weight shape (out_channels=embed_dim, in_channels, kernel=patch).
    w_proj = 0.02 * jax.random.normal(kw, (embed_dim, in_c, patch_size),
                                      dtype=jnp.float32)
    b_proj = 0.1 * jax.random.normal(kb, (embed_dim,), dtype=jnp.float32)

    # bias=False path (module default).
    out = jax.block_until_ready(patch_embed(x, w_proj, None, patch_size=patch_size))
    ref = patch_embed_ref(x, w_proj, None, patch_size=patch_size)
    assert out.shape == (B, img_size // patch_size, embed_dim)
    assert jnp.allclose(out, ref, atol=1e-5, rtol=1e-5), "mismatch vs reference (no bias)"

    # bias=True path (module supports it).
    out_b = jax.block_until_ready(patch_embed(x, w_proj, b_proj, patch_size=patch_size))
    ref_b = patch_embed_ref(x, w_proj, b_proj, patch_size=patch_size)
    assert jnp.allclose(out_b, ref_b, atol=1e-5, rtol=1e-5), "mismatch vs reference (bias)"

    print("KERNEL_OK")
</pallas_src>

<mosaic_0001>
module attributes {stable_mosaic.version = 11 : i64} {
  func.func @_patch_embed_kernel(%arg0: i32, %arg1: memref<16x20xf32, #tpu.memory_space<vmem>>, %arg2: memref<20x128xf32, #tpu.memory_space<vmem>>, %arg3: memref<16x128xf32, #tpu.memory_space<vmem>>) attributes {dimension_semantics = [#tpu.dimension_semantics<parallel>], iteration_bounds = array<i64: 1>, scalar_prefetch = 0 : i64, scratch_operands = 0 : i64, tpu.core_type = #tpu.core_type<tc>, window_params = [{transform_indices = @transform_0, window_bounds = array<i64: 16, 20>}, {pipeline_mode = #tpu.pipeline_mode<synchronous>, transform_indices = @transform_1, window_bounds = array<i64: 20, 128>}, {transform_indices = @transform_2, window_bounds = array<i64: 16, 128>}]} {
    %c0 = arith.constant 0 : index
    %c0_0 = arith.constant 0 : index
    %0 = vector.load %arg1[%c0, %c0_0] : memref<16x20xf32, #tpu.memory_space<vmem>>, vector<16x20xf32>
    %c0_1 = arith.constant 0 : index
    %c0_2 = arith.constant 0 : index
    %1 = vector.load %arg2[%c0_1, %c0_2] : memref<20x128xf32, #tpu.memory_space<vmem>>, vector<20x128xf32>
    %cst = arith.constant dense<0.000000e+00> : vector<16x128xf32>
    %2 = tpu.matmul %0, %1, %cst {dimension_numbers = #tpu.dot_dimension_numbers<[1], [0], [0], [1], [0, 0, 1, 1], [], []>} : vector<16x20xf32>, vector<20x128xf32>, vector<16x128xf32> -> vector<16x128xf32>
    %c0_3 = arith.constant 0 : index
    %c0_4 = arith.constant 0 : index
    %3 = vector.load %arg3[%c0_3, %c0_4] : memref<16x128xf32, #tpu.memory_space<vmem>>, vector<16x128xf32>
    tpu.vector_store %arg3[%c0_3, %c0_4], %2 {strides = array<i32>} : memref<16x128xf32, #tpu.memory_space<vmem>>, vector<16x128xf32>,
    return
  }
  func.func @transform_0(%arg0: i32) -> (i32, i32) {
    %c0_i32 = arith.constant 0 : i32
    %c0_i32_0 = arith.constant 0 : i32
    return %arg0, %c0_i32 : i32, i32
  }
  func.func @transform_1(%arg0: i32) -> (i32, i32) {
    %c0_i32 = arith.constant 0 : i32
    %c0_i32_0 = arith.constant 0 : i32
    %c0_i32_1 = arith.constant 0 : i32
    return %c0_i32, %c0_i32_0 : i32, i32
  }
  func.func @transform_2(%arg0: i32) -> (i32, i32) {
    %c0_i32 = arith.constant 0 : i32
    %c0_i32_0 = arith.constant 0 : i32
    return %arg0, %c0_i32 : i32, i32
  }
}

</mosaic_0001>

<llo_original>
// kernel: tpu_custom_call.1
$region0: #{tpu_custom_call.1}
  #allocation0 [shape = 'u32[]', space=smem, size = 0x4, offset = 0x4, fixed_abs, tag = 'smem constant byte address 0x4 - core index']
  #allocation1 [shape = 'u32[144,128]{1,0:T(1,128)}', space=vmem, size = 0x12000, scoped, tag = 'internal scratch']
  %s0 = inlined_call_operand.hbm [shape: f32[16,20], index: 0, kind: input, shape index: {}]
  %s1 = inlined_call_operand.hbm [shape: f32[20,128], index: 1, kind: input, shape index: {}]
  %s2 = inlined_call_operand.hbm [shape: f32[16,128], index: 2, kind: output, shape index: {}]
  %s3 = sld [smem:[#allocation0]]
  $region26: #{tpu_custom_call.1} parent=0
    _
  %s5 = ssub.s32 1, %s3
  %s6 = scalar_select 0, %s5, %s3
  $region1: #{tpu_custom_call.1} parent=0
    #allocation2 [shape = 'u8[8192]{0}', space=vmem, size = 0x2000, scoped, tag = 'input window, operand 0, single buffered']
    #allocation3 [shape = 's32[1]{0}', space=sflag, size = 0x4, scoped, tag = 'scoped memory for tpu_custom_call.1']
    #allocation4 [shape = 's32[1]{0}', space=sflag, size = 0x4, scoped, tag = 'scoped memory for tpu_custom_call.1']
    #allocation5 [shape = 'u8[12288]{0}', space=vmem, size = 0x3000, scoped, tag = 'input window, operand 1, single buffered']
    #allocation6 [shape = 's32[1]{0}', space=sflag, size = 0x4, scoped, tag = 'scoped memory for tpu_custom_call.1']
    #allocation7 [shape = 'u8[8192]{0}', space=vmem, size = 0x2000, scoped, tag = 'output window, operand 0, single buffered']
    %7 = vsyncpa [#allocation3], 0
    %8 = vsyncpa [#allocation6], 0
    %9 = vsyncpa [#allocation4], 0
    // Predicated region
    $region2: #{tpu_custom_call.1} parent=1 // pred_check
      _
    $region3: #{tpu_custom_call.1} parent=1 // pred_check_branch
      %11 = sbr.rel (0) target = $region5
    $region4: #{tpu_custom_call.1} parent=1 // pred_region
      %s13 = ssub.s32 256, 256
      %14 = vsyncadd [#allocation3], %s13
      %s15 = sshll.u32 [#allocation2], 4
      %s16 = int_to_ptr.vmem [resolvable:$true] %s15
      %21 = dma.hbm_to_vmem [thread:$0]  %s0, 256, %s16, [#allocation3], 128, 128, 8
    $region5: #{tpu_custom_call.1} parent=1 // pred_fallthru
      _
    // Predicated region
    $region6: #{tpu_custom_call.1} parent=1 // pred_check
      _
    $region7: #{tpu_custom_call.1} parent=1 // pred_check_branch
      %23 = sbr.rel (0) target = $region9
    $region8: #{tpu_custom_call.1} parent=1 // pred_region
      %s25 = ssub.s32 384, 384
      %26 = vsyncadd [#allocation6], %s25
      %s27 = sshll.u32 [#allocation5], 4
      %s28 = int_to_ptr.vmem [resolvable:$true] %s27
      %33 = dma.hbm_to_vmem [thread:$0]  %s1, 384, %s28, [#allocation6], 128, 128, 8
    $region9: #{tpu_custom_call.1} parent=1 // pred_fallthru
      _
    // Predicated region
    $region10: #{tpu_custom_call.1} parent=1 // pred_check
      _
    $region11: #{tpu_custom_call.1} parent=1 // pred_check_branch
      %35 = sbr.rel (0) target = $region13
    $region12: #{tpu_custom_call.1} parent=1 // pred_region
      %36 = dma.done [#allocation3], 256
    $region13: #{tpu_custom_call.1} parent=1 // pred_fallthru
      _
    // Predicated region
    $region14: #{tpu_custom_call.1} parent=1 // pred_check
      _
    $region15: #{tpu_custom_call.1} parent=1 // pred_check_branch
      %38 = sbr.rel (0) target = $region17
    $region16: #{tpu_custom_call.1} parent=1 // pred_region
      %39 = dma.done [#allocation6], 384
    $region17: #{tpu_custom_call.1} parent=1 // pred_fallthru
      _
    %v40 = vld [vmem:[#allocation2] sm:$0xff]
    %v41 = vld [vmem:[#allocation2 + $0x8] sm:$0xff]
    %v42 = vld [vmem:[#allocation5] sm:$0xff]
    %v43 = vld [vmem:[#allocation5 + $0x8] sm:$0xff]
    %v44 = vld [vmem:[#allocation5 + $0x10] sm:$0xf]
    %vm45 = vcmask 162816
    %v47 = vsel %vm45, %v40, 0
    %v50 = vsel %vm45, %v41, 0
    %vm52 = vcmask 1043456
    %v54 = vsel %vm52, %v44, 0
    %56 = vmatprep.subr.mxu0 0.0
    %57 = vmatpush1.msra.mxu0 %v42
    %58 = vmatprep.subr.mxu0 0.0
    %59 = vmatpush1.msra.mxu0 %v43
    %60 = vmatprep.subr.mxu0 0.0
    %61 = vmatpush1.msra.mxu0 %v54
    %62 = vmatprep.subr.mxu0 0.0
    %63 = vmatpush1.msra.mxu0 0.0
    %64 = vmatprep.subr.mxu0 0.0
    %65 = vmatpush1.msra.mxu0 0.0
    %66 = vmatprep.subr.mxu0 0.0
    %67 = vmatpush1.msra.mxu0 0.0
    %68 = vmatprep.subr.mxu0 0.0
    %69 = vmatpush1.msra.mxu0 0.0
    %70 = vmatprep.subr.mxu0 0.0
    %71 = vmatpush1.msra.mxu0 0.0
    %72 = vmatprep.subr.mxu0 0.0
    %73 = vmatpush1.msra.mxu0 0.0
    %74 = vmatprep.subr.mxu0 0.0
    %75 = vmatpush1.msra.mxu0 0.0
    %76 = vmatprep.subr.mxu0 0.0
    %77 = vmatpush1.msra.mxu0 0.0
    %78 = vmatprep.subr.mxu0 0.0
    %79 = vmatpush1.msra.mxu0 0.0
    %80 = vmatprep.subr.mxu0 0.0
    %81 = vmatpush1.msra.mxu0 0.0
    %82 = vmatprep.subr.mxu0 0.0
    %83 = vmatpush1.msra.mxu0 0.0
    %84 = vmatprep.subr.mxu0 0.0
    %85 = vmatpush1.msra.mxu0 0.0
    %86 = vmatprep.subr.mxu0 0.0
    %87 = vmatpush1.msra.mxu0 0.0
    %88 = vmatprep.subr.mxu0 0.0
    %89 = vmatpush1.msra.mxu0 0.0
    %90 = vmatprep.subr.mxu0 0.0
    %91 = vmatpush1.msra.mxu0 0.0
    %92 = vmatprep.subr.mxu0 0.0
    %93 = vmatpush1.msra.mxu0 0.0
    %94 = vmatprep.subr.mxu0 0.0
    %95 = vmatpush1.msra.mxu0 0.0
    %96 = vmatprep.subr.mxu0 0.0
    %97 = vmatpush1.msra.mxu0 0.0
    %98 = vmatprep.subr.mxu0 0.0
    %99 = vmatpush1.msra.mxu0 0.0
    %100 = vmatprep.subr.mxu0 0.0
    %101 = vmatpush1.msra.mxu0 0.0
    %102 = vmatprep.subr.mxu0 0.0
    %103 = vmatpush1.msra.mxu0 0.0
    %104 = vmatprep.subr.mxu0 0.0
    %105 = vmatpush1.msra.mxu0 0.0
    %106 = vmatprep.subr.mxu0 0.0
    %107 = vmatpush1.msra.mxu0 0.0
    %108 = vmatprep.subr.mxu0 0.0
    %109 = vmatpush1.msra.mxu0 0.0
    %110 = vmatprep.subr.mxu0 0.0
    %111 = vmatpush1.msra.mxu0 0.0
    %112 = vmatprep.subr.mxu0 0.0
    %113 = vmatpush1.msra.mxu0 0.0
    %114 = vmatprep.subr.mxu0 0.0
    %115 = vmatpush1.msra.mxu0 0.0
    %116 = vmatprep.subr.mxu0 0.0
    %117 = vmatpush1.msra.mxu0 0.0
    %118 = vmatprep.subr.mxu0 0.0
    %119 = vmatpush1.msra.mxu0 0.0
    %120 = vmatprep.mubr.f32.mxu0 0.0
    %121 = vmatmul.mubr.f32.gmra.mrb[0].mxu0 %v47
    %v122 = vpop.f32.mrb[0].mxu0
    %v123 = vadd.f32 0.0, %v122
    %v124 = vpop.f32.mrb[0].mxu0
    %125 = vmatprep.mubr.f32.mxu0 0.0
    %126 = vmatmul.mubr.f32.gmra.mrb[0].mxu0 %v50
    %v127 = vpop.f32.mrb[0].mxu0
    %v128 = vadd.f32 0.0, %v127
    %v129 = vpop.f32.mrb[0].mxu0
    %130 = vdwg.mxu0
    %131 = vst [vmem:[#allocation7] sm:$0xff] %v123
    %132 = vst [vmem:[#allocation7 + $0x8] sm:$0xff] %v128
    // Predicated region
    $region18: #{tpu_custom_call.1} parent=1 // pred_check
      _
    $region19: #{tpu_custom_call.1} parent=1 // pred_check_branch
      %134 = sbr.rel (0) target = $region21
    $region20: #{tpu_custom_call.1} parent=1 // pred_region
      %s136 = ssub.s32 256, 256
      %137 = vsyncadd [#allocation4], %s136
      %s138 = sshll.u32 [#allocation7], 4
      %s139 = int_to_ptr.vmem [resolvable:$true] %s138
      %144 = dma.vmem_to_hbm [thread:$0]  %s139, 256, %s2, [#allocation4], 128, 128, 8
    $region21: #{tpu_custom_call.1} parent=1 // pred_fallthru
      _
    // Predicated region
    $region22: #{tpu_custom_call.1} parent=1 // pred_check
      _
    $region23: #{tpu_custom_call.1} parent=1 // pred_check_branch
      %146 = sbr.rel (0) target = $region25
    $region24: #{tpu_custom_call.1} parent=1 // pred_region
      %147 = dma.done [#allocation4], 256
    $region25: #{tpu_custom_call.1} parent=1 // pred_fallthru
      _
    %148 = vsyncpa [#allocation3], 1
    %149 = vsyncpa [#allocation6], 1
    %150 = vsyncpa [#allocation4], 1

</llo_original>
